<compile_context>
chip_gen: v7x
topology: tpu7x:2x2x1
jax: 0.10.0
libtpu: 0.0.40
codegen_flags: <defaults>
</compile_context>

<pallas_src>
import jax
import jax.numpy as jnp
from jax.experimental import pallas as pl
from jax.experimental.pallas import tpu as pltpu  # noqa: F401  (kept for TPU-specific knobs)


# ----------------------------- Pallas kernels ------------------------------ #

def _proj_kernel(x_ref, w_ref, b_ref, o_ref):
    """Parallel time-invariant projection: (S*B, I) @ (I, 3H) + b."""
    o_ref[...] = (jnp.dot(x_ref[...], w_ref[...],
                          preferred_element_type=jnp.float32)
                  + b_ref[...]).astype(o_ref.dtype)


def _gru_seq_kernel_enc(xp_ref, h0_ref, wh_ru_ref, wh_n_ref, out_ref, hN_ref):
    """Encoder recurrence. xp_ref holds x@[Wrx|Wux|Wnx]+b for every timestep."""
    S = xp_ref.shape[0]
    H = h0_ref.shape[-1]
    wh_ru = wh_ru_ref[...]          # (H, 2H)  = [Wrh | Wuh]
    wh_n = wh_n_ref[...]            # (H, H)   = Wnh

    def step(t, h):
        xp_t = xp_ref[t]            # (B, 3H), biases already folded in
        g_ru = xp_t[:, :2 * H] + jnp.dot(h, wh_ru,
                                         preferred_element_type=jnp.float32)
        r = jax.nn.sigmoid(g_ru[:, :H])
        u = jax.nn.sigmoid(g_ru[:, H:])
        n = jnp.tanh(xp_t[:, 2 * H:]
                     + jnp.dot(r * h, wh_n,
                               preferred_element_type=jnp.float32))
        h_new = n + u * (h - n)
        out_ref[t] = h_new.astype(out_ref.dtype)
        return h_new

    h_last = jax.lax.fori_loop(0, S, step, h0_ref[...].astype(jnp.float32))
    hN_ref[...] = h_last.astype(hN_ref.dtype)


def _gru_seq_kernel_dec(xp_ref, h0_ref, s_ref,
                        wh_ru_ref, wh_n_ref, ws_ru_ref, ws_n_ref,
                        out_ref, hN_ref):
    """Decoder recurrence (summary vector feeds every gate)."""
    S = xp_ref.shape[0]
    H = h0_ref.shape[-1]
    wh_ru = wh_ru_ref[...]          # (H, 2H)  = [Wrh | Wuh]
    wh_n = wh_n_ref[...]            # (H, H)   = Wnh
    ws_n = ws_n_ref[...]            # (H, H)   = Wns
    s = s_ref[...].astype(jnp.float32)
    # Time-invariant summary contribution to the r/u gates: computed once.
    sp_ru = jnp.dot(s, ws_ru_ref[...], preferred_element_type=jnp.float32)  # (B, 2H)

    def step(t, h):
        xp_t = xp_ref[t]            # (B, 3H)
        g_ru = (xp_t[:, :2 * H] + sp_ru
                + jnp.dot(h, wh_ru, preferred_element_type=jnp.float32))
        r = jax.nn.sigmoid(g_ru[:, :H])
        u = jax.nn.sigmoid(g_ru[:, H:])
        n = jnp.tanh(xp_t[:, 2 * H:]
                     + jnp.dot(r * h, wh_n, preferred_element_type=jnp.float32)
                     + jnp.dot(r * s, ws_n, preferred_element_type=jnp.float32))
        h_new = n + u * (h - n)
        out_ref[t] = h_new.astype(out_ref.dtype)
        return h_new

    h_last = jax.lax.fori_loop(0, S, step, h0_ref[...].astype(jnp.float32))
    hN_ref[...] = h_last.astype(hN_ref.dtype)


# ------------------------------ Pallas wrapper ----------------------------- #

def gru_layer_forward(x, h0, p, summary=None):
    """One GRULayer.forward: x [S,B,I], h0 [B,H], summary [B,H] or None."""
    S, B, I = x.shape
    H = h0.shape[-1]

    # --- hoisted, embarrassingly-parallel x-projection for all timesteps ---
    x2d = x.reshape(S * B, I)
    xp = pl.pallas_call(
        _proj_kernel,
        out_shape=jax.ShapeDtypeStruct((S * B, 3 * H), jnp.float32),
    )(x2d, p["wx"], p["bx"])
    xp = xp.reshape(S, B, 3 * H)

    out_shapes = (jax.ShapeDtypeStruct((S, B, H), x.dtype),
                  jax.ShapeDtypeStruct((B, H), x.dtype))

    if summary is None:
        out, h_last = pl.pallas_call(
            _gru_seq_kernel_enc,
            out_shape=out_shapes,
        )(xp, h0, p["wh_ru"], p["wh_n"])
    else:
        out, h_last = pl.pallas_call(
            _gru_seq_kernel_dec,
            out_shape=out_shapes,
        )(xp, h0, summary, p["wh_ru"], p["wh_n"], p["ws_ru"], p["ws_n"])
    return out, h_last


def gru_forward(x, layer_params, hiddens=None, summarys=None):
    """GRU.forward: stacks num_layers GRULayer kernels."""
    num_layers = len(layer_params)
    S, B, _ = x.shape
    H = layer_params[0]["wh_n"].shape[0]
    if hiddens is None:
        hiddens = jnp.zeros((num_layers, B, H), x.dtype)
    output = x
    next_hiddens = []
    for i in range(num_layers):
        s = None if summarys is None else summarys[i]
        output, h = gru_layer_forward(output, hiddens[i], layer_params[i], s)
        next_hiddens.append(h)
    return output, jnp.stack(next_hiddens, axis=0)


# ----------------------------- parameter init ------------------------------ #

def init_gru_params(key, input_size, hidden_size, num_layers, is_decoder):
    """Fused-weight layout:
       wx    (in, 3H)  = [Wrx | Wux | Wnx]   bx (1, 3H) = [br | bu | bn]
       wh_ru (H, 2H)   = [Wrh | Wuh]         wh_n (H, H) = Wnh
       ws_ru (H, 2H)   = [Wrs | Wus]         ws_n (H, H) = Wns   (decoder only)
    """
    params = []
    H = hidden_size
    for layer in range(num_layers):
        in_sz = input_size if layer == 0 else H
        combined = in_sz + (2 * H if is_decoder else H)
        k = 1.0 / jnp.sqrt(combined)
        names = [("wx", (in_sz, 3 * H)), ("bx", (1, 3 * H)),
                 ("wh_ru", (H, 2 * H)), ("wh_n", (H, H))]
        if is_decoder:
            names += [("ws_ru", (H, 2 * H)), ("ws_n", (H, H))]
        p = {}
        for name, shape in names:
            key, sub = jax.random.split(key)
            p[name] = jax.random.uniform(sub, shape, jnp.float32, -k, k)
        params.append(p)
    return params, key


# ---------------------------- pure-JAX reference ---------------------------- #

def _ref_layer(x, h0, p, summary=None):
    H = h0.shape[-1]
    wrx, wux, wnx = p["wx"][:, :H], p["wx"][:, H:2 * H], p["wx"][:, 2 * H:]
    br, bu, bn = p["bx"][0, :H], p["bx"][0, H:2 * H], p["bx"][0, 2 * H:]
    wrh, wuh = p["wh_ru"][:, :H], p["wh_ru"][:, H:]
    wnh = p["wh_n"]
    if summary is not None:
        wrs, wus = p["ws_ru"][:, :H], p["ws_ru"][:, H:]
        wns = p["ws_n"]

    def step(h, xt):
        pre_r = xt @ wrx + h @ wrh + br
        pre_u = xt @ wux + h @ wuh + bu
        if summary is not None:
            pre_r = pre_r + summary @ wrs
            pre_u = pre_u + summary @ wus
        r = jax.nn.sigmoid(pre_r)
        u = jax.nn.sigmoid(pre_u)
        pre_n = xt @ wnx + (r * h) @ wnh + bn
        if summary is not None:
            pre_n = pre_n + (r * summary) @ wns
        n = jnp.tanh(pre_n)
        h_new = u * h + (1.0 - u) * n
        return h_new, h_new

    hN, outs = jax.lax.scan(step, h0, x)
    return outs, hN


def _ref_gru(x, layer_params, hiddens=None, summarys=None):
    num_layers = len(layer_params)
    S, B, _ = x.shape
    H = layer_params[0]["wh_n"].shape[0]
    if hiddens is None:
        hiddens = jnp.zeros((num_layers, B, H), x.dtype)
    out = x
    hs = []
    for i in range(num_layers):
        s = None if summarys is None else summarys[i]
        out, h = _ref_layer(out, hiddens[i], layer_params[i], s)
        hs.append(h)
    return out, jnp.stack(hs, axis=0)


# ----------------------------------- main ----------------------------------- #

if __name__ == "__main__":
    SEQ, BATCH, IN, HID, LAYERS = 8, 4, 16, 32, 2

    key = jax.random.PRNGKey(0)

    # ----- encoder GRU (is_decoder=False, hiddens default to zeros) -----
    enc_params, key = init_gru_params(key, IN, HID, LAYERS, is_decoder=False)
    key, kx = jax.random.split(key)
    x = jax.random.normal(kx, (SEQ, BATCH, IN), jnp.float32)

    enc_out, enc_h = gru_forward(x, enc_params)
    enc_out = jax.block_until_ready(enc_out)
    enc_h = jax.block_until_ready(enc_h)

    ref_out, ref_h = _ref_gru(x, enc_params)
    assert enc_out.shape == (SEQ, BATCH, HID) and enc_h.shape == (LAYERS, BATCH, HID)
    assert jnp.allclose(enc_out, ref_out, atol=1e-4, rtol=1e-4)
    assert jnp.allclose(enc_h, ref_h, atol=1e-4, rtol=1e-4)

    # ----- decoder GRU (is_decoder=True, needs hiddens + summarys) -----
    dec_params, key = init_gru_params(key, IN, HID, LAYERS, is_decoder=True)
    key, kh, ks = jax.random.split(key, 3)
    hiddens = jax.random.normal(kh, (LAYERS, BATCH, HID), jnp.float32)
    summarys = jax.random.normal(ks, (LAYERS, BATCH, HID), jnp.float32)

    dec_out, dec_h = gru_forward(x, dec_params, hiddens, summarys)
    dec_out = jax.block_until_ready(dec_out)
    dec_h = jax.block_until_ready(dec_h)

    ref_dout, ref_dh = _ref_gru(x, dec_params, hiddens, summarys)
    assert jnp.allclose(dec_out, ref_dout, atol=1e-4, rtol=1e-4)
    assert jnp.allclose(dec_h, ref_dh, atol=1e-4, rtol=1e-4)

    print("KERNEL_OK")
</pallas_src>

<mosaic_0001>
module attributes {stable_mosaic.version = 11 : i64} {
  func.func @_proj_kernel(%arg0: memref<32x16xf32, #tpu.memory_space<vmem>>, %arg1: memref<16x96xf32, #tpu.memory_space<vmem>>, %arg2: memref<1x96xf32, #tpu.memory_space<vmem>>, %arg3: memref<32x96xf32, #tpu.memory_space<vmem>>) attributes {dimension_semantics = [], scalar_prefetch = 0 : i64, scratch_operands = 0 : i64, tpu.core_type = #tpu.core_type<tc>} {
    %c0 = arith.constant 0 : index
    %c0_0 = arith.constant 0 : index
    %0 = vector.load %arg0[%c0, %c0_0] : memref<32x16xf32, #tpu.memory_space<vmem>>, vector<32x16xf32>
    %c0_1 = arith.constant 0 : index
    %c0_2 = arith.constant 0 : index
    %1 = vector.load %arg1[%c0_1, %c0_2] : memref<16x96xf32, #tpu.memory_space<vmem>>, vector<16x96xf32>
    %cst = arith.constant dense<0.000000e+00> : vector<32x96xf32>
    %2 = tpu.matmul %0, %1, %cst {dimension_numbers = #tpu.dot_dimension_numbers<[1], [0], [0], [1], [0, 0, 1, 1], [], []>} : vector<32x16xf32>, vector<16x96xf32>, vector<32x96xf32> -> vector<32x96xf32>
    %c0_3 = arith.constant 0 : index
    %c0_4 = arith.constant 0 : index
    %3 = vector.load %arg2[%c0_3, %c0_4] : memref<1x96xf32, #tpu.memory_space<vmem>>, vector<1x96xf32>
    %4 = vector.broadcast %3 : vector<1x96xf32> to vector<32x96xf32>
    %5 = arith.addf %2, %4 : vector<32x96xf32>
    %c0_5 = arith.constant 0 : index
    %c0_6 = arith.constant 0 : index
    %6 = vector.load %arg3[%c0_5, %c0_6] : memref<32x96xf32, #tpu.memory_space<vmem>>, vector<32x96xf32>
    tpu.vector_store %arg3[%c0_5, %c0_6], %5 {strides = array<i32>} : memref<32x96xf32, #tpu.memory_space<vmem>>, vector<32x96xf32>,
    return
  }
}

</mosaic_0001>

<llo_original>
// kernel: tpu_custom_call.1
$region0: #{tpu_custom_call.1}
  #allocation0 [shape = 'u32[]', space=smem, size = 0x4, offset = 0x4, fixed_abs, tag = 'smem constant byte address 0x4 - core index']
  #allocation1 [shape = 'u32[144,128]{1,0:T(1,128)}', space=vmem, size = 0x12000, scoped, tag = 'internal scratch']
  %s0 = inlined_call_operand.vmem [shape: f32[32,16], index: 0, kind: input, shape index: {}]
  %s1 = inlined_call_operand.vmem [shape: f32[16,96], index: 1, kind: input, shape index: {}]
  %s2 = inlined_call_operand.vmem [shape: f32[1,96], index: 2, kind: input, shape index: {}]
  %s3 = inlined_call_operand.hbm [shape: f32[32,96], index: 3, kind: output, shape index: {}]
  %s4 = sld [smem:[#allocation0]]
  $region22: #{tpu_custom_call.1} parent=0
    _
  %s6 = ssub.s32 1, %s4
  %s7 = scalar_select 0, %s6, %s4
  $region1: #{tpu_custom_call.1} parent=0
    #allocation2 [shape = 'u8[16384]{0}', space=vmem, size = 0x4000, scoped, tag = 'output window, operand 0, single buffered']
    #allocation3 [shape = 's32[1]{0}', space=sflag, size = 0x4, scoped, tag = 'scoped memory for tpu_custom_call.1']
    %8 = vsyncpa [#allocation3], 0
    // Predicated region
    $region2: #{tpu_custom_call.1} parent=1 // pred_check
      _
    $region3: #{tpu_custom_call.1} parent=1 // pred_check_branch
      %10 = sbr.rel (0) target = $region5
    $region4: #{tpu_custom_call.1} parent=1 // pred_region
      _
    $region5: #{tpu_custom_call.1} parent=1 // pred_fallthru
      _
    // Predicated region
    $region6: #{tpu_custom_call.1} parent=1 // pred_check
      _
    $region7: #{tpu_custom_call.1} parent=1 // pred_check_branch
      %12 = sbr.rel (0) target = $region9
    $region8: #{tpu_custom_call.1} parent=1 // pred_region
      _
    $region9: #{tpu_custom_call.1} parent=1 // pred_fallthru
      _
    // Predicated region
    $region10: #{tpu_custom_call.1} parent=1 // pred_check
      _
    $region11: #{tpu_custom_call.1} parent=1 // pred_check_branch
      %14 = sbr.rel (0) target = $region13
    $region12: #{tpu_custom_call.1} parent=1 // pred_region
      _
    $region13: #{tpu_custom_call.1} parent=1 // pred_fallthru
      _
    %v15 = vld [vmem:[%s0] sm:$0xff]
    %v16 = vld [vmem:[%s0 + $0x8] sm:$0xff]
    %v17 = vld [vmem:[%s0 + $0x10] sm:$0xff]
    %v18 = vld [vmem:[%s0 + $0x18] sm:$0xff]
    %v19 = vld [vmem:[%s1] sm:$0xff]
    %v20 = vld [vmem:[%s1 + $0x8] sm:$0xff]
    %v21 = vld [vmem:[%s2] sm:$0x1]
    %v23 = vlaneseq
    %v24 = vshrl.u32 %v23, 7
    %v25 = vsub.s32 0, %v24
    %v26 = vrot.slane %v21, %v25
    %vm28 = vcmask 130048
    %v30 = vsel %vm28, %v15, 0
    %v33 = vsel %vm28, %v16, 0
    %v36 = vsel %vm28, %v17, 0
    %v39 = vsel %vm28, %v18, 0
    %41 = vmatprep.subr.mxu0 0.0
    %42 = vmatpush1.msra.mxu0 %v19
    %43 = vmatprep.subr.mxu0 0.0
    %44 = vmatpush1.msra.mxu0 %v20
    %45 = vmatprep.subr.mxu0 0.0
    %46 = vmatpush1.msra.mxu0 0.0
    %47 = vmatprep.subr.mxu0 0.0
    %48 = vmatpush1.msra.mxu0 0.0
    %49 = vmatprep.subr.mxu0 0.0
    %50 = vmatpush1.msra.mxu0 0.0
    %51 = vmatprep.subr.mxu0 0.0
    %52 = vmatpush1.msra.mxu0 0.0
    %53 = vmatprep.subr.mxu0 0.0
    %54 = vmatpush1.msra.mxu0 0.0
    %55 = vmatprep.subr.mxu0 0.0
    %56 = vmatpush1.msra.mxu0 0.0
    %57 = vmatprep.subr.mxu0 0.0
    %58 = vmatpush1.msra.mxu0 0.0
    %59 = vmatprep.subr.mxu0 0.0
    %60 = vmatpush1.msra.mxu0 0.0
    %61 = vmatprep.subr.mxu0 0.0
    %62 = vmatpush1.msra.mxu0 0.0
    %63 = vmatprep.subr.mxu0 0.0
    %64 = vmatpush1.msra.mxu0 0.0
    %65 = vmatprep.subr.mxu0 0.0
    %66 = vmatpush1.msra.mxu0 0.0
    %67 = vmatprep.subr.mxu0 0.0
    %68 = vmatpush1.msra.mxu0 0.0
    %69 = vmatprep.subr.mxu0 0.0
    %70 = vmatpush1.msra.mxu0 0.0
    %71 = vmatprep.subr.mxu0 0.0
    %72 = vmatpush1.msra.mxu0 0.0
    %73 = vmatprep.subr.mxu0 0.0
    %74 = vmatpush1.msra.mxu0 0.0
    %75 = vmatprep.subr.mxu0 0.0
    %76 = vmatpush1.msra.mxu0 0.0
    %77 = vmatprep.subr.mxu0 0.0
    %78 = vmatpush1.msra.mxu0 0.0
    %79 = vmatprep.subr.mxu0 0.0
    %80 = vmatpush1.msra.mxu0 0.0
    %81 = vmatprep.subr.mxu0 0.0
    %82 = vmatpush1.msra.mxu0 0.0
    %83 = vmatprep.subr.mxu0 0.0
    %84 = vmatpush1.msra.mxu0 0.0
    %85 = vmatprep.subr.mxu0 0.0
    %86 = vmatpush1.msra.mxu0 0.0
    %87 = vmatprep.subr.mxu0 0.0
    %88 = vmatpush1.msra.mxu0 0.0
    %89 = vmatprep.subr.mxu0 0.0
    %90 = vmatpush1.msra.mxu0 0.0
    %91 = vmatprep.subr.mxu0 0.0
    %92 = vmatpush1.msra.mxu0 0.0
    %93 = vmatprep.subr.mxu0 0.0
    %94 = vmatpush1.msra.mxu0 0.0
    %95 = vmatprep.subr.mxu0 0.0
    %96 = vmatpush1.msra.mxu0 0.0
    %97 = vmatprep.subr.mxu0 0.0
    %98 = vmatpush1.msra.mxu0 0.0
    %99 = vmatprep.subr.mxu0 0.0
    %100 = vmatpush1.msra.mxu0 0.0
    %101 = vmatprep.subr.mxu0 0.0
    %102 = vmatpush1.msra.mxu0 0.0
    %103 = vmatprep.subr.mxu0 0.0
    %104 = vmatpush1.msra.mxu0 0.0
    %105 = vmatprep.mubr.f32.mxu0 0.0
    %106 = vmatmul.mubr.f32.gmra.mrb[0].mxu0 %v30
    %v107 = vpop.f32.mrb[0].mxu0
    %v108 = vadd.f32 %v26, %v107
    %v109 = vpop.f32.mrb[0].mxu0
    %110 = vmatprep.mubr.f32.mxu0 0.0
    %111 = vmatmul.mubr.f32.gmra.mrb[0].mxu0 %v33
    %v112 = vpop.f32.mrb[0].mxu0
    %v113 = vadd.f32 %v26, %v112
    %v114 = vpop.f32.mrb[0].mxu0
    %115 = vmatprep.mubr.f32.mxu0 0.0
    %116 = vmatmul.mubr.f32.gmra.mrb[0].mxu0 %v36
    %v117 = vpop.f32.mrb[0].mxu0
    %v118 = vadd.f32 %v26, %v117
    %v119 = vpop.f32.mrb[0].mxu0
    %120 = vmatprep.mubr.f32.mxu0 0.0
    %121 = vmatmul.mubr.f32.gmra.mrb[0].mxu0 %v39
    %v122 = vpop.f32.mrb[0].mxu0
    %v123 = vadd.f32 %v26, %v122
    %v124 = vpop.f32.mrb[0].mxu0
    %125 = vdwg.mxu0
    %vm126 = vcmask 785408
    %127 = vst.msk [vmem:[#allocation2] sm:$0xff] %vm126, %v108
    %128 = vst.msk [vmem:[#allocation2 + $0x8] sm:$0xff] %vm126, %v113
    %129 = vst.msk [vmem:[#allocation2 + $0x10] sm:$0xff] %vm126, %v118
    %130 = vst.msk [vmem:[#allocation2 + $0x18] sm:$0xff] %vm126, %v123
    // Predicated region
    $region14: #{tpu_custom_call.1} parent=1 // pred_check
      _
    $region15: #{tpu_custom_call.1} parent=1 // pred_check_branch
      %132 = sbr.rel (0) target = $region17
    $region16: #{tpu_custom_call.1} parent=1 // pred_region
      %s134 = ssub.s32 512, 512
      %135 = vsyncadd [#allocation3], %s134
      %s136 = sshll.u32 [#allocation2], 4
      %s137 = int_to_ptr.vmem [resolvable:$true] %s136
      %142 = dma.vmem_to_hbm [thread:$0]  %s137, 512, %s3, [#allocation3], 128, 128, 8
    $region17: #{tpu_custom_call.1} parent=1 // pred_fallthru
      _
    // Predicated region
    $region18: #{tpu_custom_call.1} parent=1 // pred_check
      _
    $region19: #{tpu_custom_call.1} parent=1 // pred_check_branch
      %144 = sbr.rel (0) target = $region21
    $region20: #{tpu_custom_call.1} parent=1 // pred_region
      %145 = dma.done [#allocation3], 512
    $region21: #{tpu_custom_call.1} parent=1 // pred_fallthru
      _
    %146 = vsyncpa [#allocation3], 1

</llo_original>
